<compile_context>
chip_gen: v6e
topology: v6e:2x2x1
jax: 0.10.0
libtpu: 0.0.40
codegen_flags: <defaults>
</compile_context>

<pallas_src>
import functools

import jax
import jax.numpy as jnp
from jax.experimental import pallas as pl
from jax.experimental.pallas import tpu as pltpu


def _round_up(x, m):
    return (x + m - 1) // m * m


def se_block_kernel(x_ref, w1_ref, b1_ref, w2_ref, b2_ref, o_ref, acc_ref, *,
                    inv_hw, hw, thw, ragged_hw):
    """One (batch-tile, spatial-tile) grid step.

    x_ref  : (TN, C, THW)  activation tile (C on sublanes, spatial on lanes)
    w1_ref : (C, Cr)    b1_ref: (1, Cr)
    w2_ref : (Cr, OUT)  b2_ref: (1, OUT)
    o_ref  : (TN, OUT)  output tile (written only at the last spatial step)
    acc_ref: (TN, C)    f32 running spatial sum (VMEM scratch)
    """
    s = pl.program_id(1)

    @pl.when(s == 0)
    def _init():
        acc_ref[...] = jnp.zeros_like(acc_ref)

    # Partial spatial (lane-axis) sum for this tile; widen to f32 here so bf16
    # activations can be streamed without changing the kernel.
    x = x_ref[...].astype(jnp.float32)                                # (TN, C, THW)
    if ragged_hw:
        # Zero out lanes past the true HW extent (only the last spatial tile is
        # ragged; for earlier tiles the mask is all-true — a few free VPU ops).
        col = jax.lax.broadcasted_iota(jnp.int32, x.shape, 2)
        x = jnp.where(col < hw - s * thw, x, 0.0)
    acc_ref[...] += jnp.sum(x, axis=-1)                               # (TN, C)

    @pl.when(s == pl.num_programs(1) - 1)
    def _finalize():
        # AdaptiveAvgPool2d(1) + Flatten: single scale by 1/HW (true HW).
        pooled = acc_ref[...] * inv_hw                                # (TN, C)

        # Linear(C, C // r) + ReLU
        h = jnp.dot(pooled, w1_ref[...], preferred_element_type=jnp.float32)
        h = jnp.maximum(h + b1_ref[...], 0.0)

        # Linear(C // r, out_channel) + Sigmoid
        y = jnp.dot(h, w2_ref[...], preferred_element_type=jnp.float32)
        o_ref[...] = jax.nn.sigmoid(y + b2_ref[...]).astype(o_ref.dtype)


def se_block(x_nchw, w1, b1, w2, b2, *, tn=None, thw=None,
             x_tile_bytes=16 << 20, vmem_limit_bytes=48 << 20):
    """x_nchw: (N, C, H, W); w1: (C, C//r); w2: (C//r, out); returns (N, out)."""
    n, c, h, w = x_nchw.shape
    hw = h * w
    hidden = w1.shape[1]
    out_channel = w2.shape[1]
    itemsize = jnp.dtype(x_nchw.dtype).itemsize

    # Free reshape only — no transpose, no extra HBM pass.  HW goes on lanes.
    x_flat = x_nchw.reshape(n, c, hw)

    # VMEM stores the block padded to (sublane, lane) tiles: C (second-to-last
    # dim) pads to the dtype's sublane multiple, THW (last dim) to 128 lanes.
    sub_mult = {1: 32, 2: 16, 4: 8}.get(itemsize, 8)
    c_pad = _round_up(c, sub_mult)

    # --- batch tile ---------------------------------------------------------
    if tn is None:
        # Aim for >=2 batch tiles so both v7x TensorCores get work; cap at 64
        # to keep (tn, C) partials out of spill territory for large C.
        tn = min(_round_up(max(1, pl.cdiv(n, 2)), 8), 64)
        # Shrink if even a minimal 128-lane spatial tile would blow the budget.
        while tn > 8 and tn * c_pad * 128 * itemsize > x_tile_bytes:
            tn //= 2
    tn = max(8, _round_up(tn, 8))

    # --- spatial (lane) tile --------------------------------------------------
    if thw is None:
        # ~16 MiB per x buffer (after VMEM tile padding) -> double-buffering
        # fits comfortably under the 48 MiB limit even on v7x (64 MiB VMEM/TC).
        lanes = x_tile_bytes // max(1, tn * c_pad * itemsize)
        thw = max(128, lanes // 128 * 128)
    if thw >= hw:
        thw = hw                      # full spatial extent -> single step
    else:
        thw = max(128, thw // 128 * 128)   # lane dim must be a multiple of 128
        if thw >= hw:
            thw = hw
    ragged_hw = (hw % thw) != 0

    grid = (pl.cdiv(n, tn), pl.cdiv(hw, thw))

    kernel = functools.partial(se_block_kernel, inv_hw=1.0 / hw, hw=hw,
                               thw=thw, ragged_hw=ragged_hw)

    return pl.pallas_call(
        kernel,
        out_shape=jax.ShapeDtypeStruct((n, out_channel), x_nchw.dtype),
        grid_spec=pltpu.PrefetchScalarGridSpec(
            num_scalar_prefetch=0,
            grid=grid,
            in_specs=[
                # Activation tile: streamed / double-buffered over (i, s).
                pl.BlockSpec((tn, c, thw), lambda i, s: (i, 0, s)),
                # Weights & biases: constant block index -> fetched once,
                # resident in VMEM for the whole grid.
                pl.BlockSpec((c, hidden), lambda i, s: (0, 0)),
                pl.BlockSpec((1, hidden), lambda i, s: (0, 0)),
                pl.BlockSpec((hidden, out_channel), lambda i, s: (0, 0)),
                pl.BlockSpec((1, out_channel), lambda i, s: (0, 0)),
            ],
            # Same output block across the reduction axis (accumulator pattern).
            out_specs=pl.BlockSpec((tn, out_channel), lambda i, s: (i, 0)),
            scratch_shapes=[pltpu.VMEM((tn, c), jnp.float32)],
        ),
        compiler_params=pltpu.CompilerParams(
            dimension_semantics=("parallel", "arbitrary"),
            vmem_limit_bytes=vmem_limit_bytes,
        ),
    )(x_flat, w1, b1.reshape(1, -1), w2, b2.reshape(1, -1))


if __name__ == "__main__":
    # Module hyper-params (SE_block(in_channel, out_channel, r)) at small shapes.
    in_channel, out_channel, r = 4, 4, 2
    hidden = in_channel // r

    key = jax.random.PRNGKey(0)
    kx, kw1, kb1, kw2, kb2, kx2 = jax.random.split(key, 6)

    # Deterministic synthetic parameters (PyTorch Linear-style uniform bounds).
    bound1 = 1.0 / (in_channel ** 0.5)
    w1 = jax.random.uniform(kw1, (in_channel, hidden), jnp.float32, -bound1, bound1)
    b1 = jax.random.uniform(kb1, (hidden,), jnp.float32, -bound1, bound1)
    bound2 = 1.0 / (hidden ** 0.5)
    w2 = jax.random.uniform(kw2, (hidden, out_channel), jnp.float32, -bound2, bound2)
    b2 = jax.random.uniform(kb2, (out_channel,), jnp.float32, -bound2, bound2)

    def ref_fn(x):
        pooled = jnp.mean(x, axis=(2, 3))
        return jax.nn.sigmoid(jnp.maximum(pooled @ w1 + b1, 0.0) @ w2 + b2)

    # Case 1: (2, 4, 16, 16) with thw=128 -> two spatial steps (accumulator path).
    x = jax.random.normal(kx, (2, in_channel, 16, 16), dtype=jnp.float32)
    out_multi = se_block(x, w1, b1, w2, b2, thw=128)
    jax.block_until_ready(out_multi)
    assert out_multi.shape == (2, out_channel)
    assert jnp.allclose(out_multi, ref_fn(x), atol=1e-5), "mismatch (two spatial tiles)"

    # Case 2: ragged spatial tail (HW=192, thw=128) + ragged batch (n=3) -> masked paths.
    x2 = jax.random.normal(kx2, (3, in_channel, 16, 12), dtype=jnp.float32)
    out_ragged = se_block(x2, w1, b1, w2, b2, thw=128)
    jax.block_until_ready(out_ragged)
    assert out_ragged.shape == (3, out_channel)
    assert jnp.allclose(out_ragged, ref_fn(x2), atol=1e-5), "mismatch (ragged tail)"

    # Case 3: default (auto) tile sizes -> single spatial step path.
    out_auto = se_block(x, w1, b1, w2, b2)
    jax.block_until_ready(out_auto)
    assert jnp.allclose(out_auto, ref_fn(x), atol=1e-5), "mismatch (auto tiles)"

    print("KERNEL_OK")
</pallas_src>

<mosaic_0001>
module attributes {stable_mosaic.version = 11 : i64} {
  func.func @se_block_kernel(%arg0: i32, %arg1: i32, %arg2: memref<8x4x128xf32, #tpu.memory_space<vmem>>, %arg3: memref<4x2xf32, #tpu.memory_space<vmem>>, %arg4: memref<1x2xf32, #tpu.memory_space<vmem>>, %arg5: memref<2x4xf32, #tpu.memory_space<vmem>>, %arg6: memref<1x4xf32, #tpu.memory_space<vmem>>, %arg7: memref<8x4xf32, #tpu.memory_space<vmem>>, %arg8: memref<8x4xf32, #tpu.memory_space<vmem>>) attributes {dimension_semantics = [#tpu.dimension_semantics<parallel>, #tpu.dimension_semantics<arbitrary>], iteration_bounds = array<i64: 1, 2>, scalar_prefetch = 0 : i64, scratch_operands = 1 : i64, tpu.core_type = #tpu.core_type<tc>, window_params = [{transform_indices = @transform_0, window_bounds = array<i64: 8, 4, 128>}, {pipeline_mode = #tpu.pipeline_mode<synchronous>, transform_indices = @transform_1, window_bounds = array<i64: 4, 2>}, {pipeline_mode = #tpu.pipeline_mode<synchronous>, transform_indices = @transform_2, window_bounds = array<i64: 1, 2>}, {pipeline_mode = #tpu.pipeline_mode<synchronous>, transform_indices = @transform_3, window_bounds = array<i64: 2, 4>}, {pipeline_mode = #tpu.pipeline_mode<synchronous>, transform_indices = @transform_4, window_bounds = array<i64: 1, 4>}, {transform_indices = @transform_5, window_bounds = array<i64: 8, 4>}]} {
    %c0_i32 = arith.constant 0 : i32
    %0 = arith.cmpi eq, %arg1, %c0_i32 : i32
    %1 = arith.extui %0 : i1 to i32
    %c0_i32_0 = arith.constant 0 : i32
    %2 = arith.cmpi ne, %1, %c0_i32_0 : i32
    scf.if %2 {
      %cst_8 = arith.constant 0.000000e+00 : f32
      %11 = vector.broadcast %cst_8 : f32 to vector<8x4xf32>
      %c0_9 = arith.constant 0 : index
      %c0_10 = arith.constant 0 : index
      %12 = vector.load %arg8[%c0_9, %c0_10] : memref<8x4xf32, #tpu.memory_space<vmem>>, vector<8x4xf32>
      tpu.vector_store %arg8[%c0_9, %c0_10], %11 {strides = array<i32>} : memref<8x4xf32, #tpu.memory_space<vmem>>, vector<8x4xf32>,
    } else {
    }
    %c0 = arith.constant 0 : index
    %c0_1 = arith.constant 0 : index
    %c0_2 = arith.constant 0 : index
    %3 = vector.load %arg2[%c0, %c0_1, %c0_2] : memref<8x4x128xf32, #tpu.memory_space<vmem>>, vector<8x4x128xf32>
    %c0_3 = arith.constant 0 : index
    %c0_4 = arith.constant 0 : index
    %4 = vector.load %arg8[%c0_3, %c0_4] : memref<8x4xf32, #tpu.memory_space<vmem>>, vector<8x4xf32>
    %cst = arith.constant dense<0.000000e+00> : vector<8x4xf32>
    %5 = vector.multi_reduction <add>, %3, %cst [2] : vector<8x4x128xf32> to vector<8x4xf32>
    %6 = arith.addf %4, %5 : vector<8x4xf32>
    %c0_5 = arith.constant 0 : index
    %c0_6 = arith.constant 0 : index
    %7 = vector.load %arg8[%c0_5, %c0_6] : memref<8x4xf32, #tpu.memory_space<vmem>>, vector<8x4xf32>
    tpu.vector_store %arg8[%c0_5, %c0_6], %6 {strides = array<i32>} : memref<8x4xf32, #tpu.memory_space<vmem>>, vector<8x4xf32>,
    %c1_i32 = arith.constant 1 : i32
    %8 = arith.cmpi eq, %arg1, %c1_i32 : i32
    %9 = arith.extui %8 : i1 to i32
    %c0_i32_7 = arith.constant 0 : i32
    %10 = arith.cmpi ne, %9, %c0_i32_7 : i32
    scf.if %10 {
      %c0_8 = arith.constant 0 : index
      %c0_9 = arith.constant 0 : index
      %11 = vector.load %arg8[%c0_8, %c0_9] : memref<8x4xf32, #tpu.memory_space<vmem>>, vector<8x4xf32>
      %cst_10 = arith.constant 3.906250e-03 : f32
      %12 = vector.broadcast %cst_10 : f32 to vector<8x4xf32>
      %13 = arith.mulf %11, %12 : vector<8x4xf32>
      %c0_11 = arith.constant 0 : index
      %c0_12 = arith.constant 0 : index
      %14 = vector.load %arg3[%c0_11, %c0_12] : memref<4x2xf32, #tpu.memory_space<vmem>>, vector<4x2xf32>
      %cst_13 = arith.constant dense<0.000000e+00> : vector<8x2xf32>
      %15 = tpu.matmul %13, %14, %cst_13 {dimension_numbers = #tpu.dot_dimension_numbers<[1], [0], [0], [1], [0, 0, 1, 1], [], []>} : vector<8x4xf32>, vector<4x2xf32>, vector<8x2xf32> -> vector<8x2xf32>
      %c0_14 = arith.constant 0 : index
      %c0_15 = arith.constant 0 : index
      %16 = vector.load %arg4[%c0_14, %c0_15] : memref<1x2xf32, #tpu.memory_space<vmem>>, vector<1x2xf32>
      %17 = vector.broadcast %16 : vector<1x2xf32> to vector<8x2xf32>
      %18 = arith.addf %15, %17 : vector<8x2xf32>
      %cst_16 = arith.constant 0.000000e+00 : f32
      %19 = vector.broadcast %cst_16 : f32 to vector<8x2xf32>
      %20 = arith.maximumf %18, %19 : vector<8x2xf32>
      %c0_17 = arith.constant 0 : index
      %c0_18 = arith.constant 0 : index
      %21 = vector.load %arg5[%c0_17, %c0_18] : memref<2x4xf32, #tpu.memory_space<vmem>>, vector<2x4xf32>
      %cst_19 = arith.constant dense<0.000000e+00> : vector<8x4xf32>
      %22 = tpu.matmul %20, %21, %cst_19 {dimension_numbers = #tpu.dot_dimension_numbers<[1], [0], [0], [1], [0, 0, 1, 1], [], []>} : vector<8x2xf32>, vector<2x4xf32>, vector<8x4xf32> -> vector<8x4xf32>
      %c0_20 = arith.constant 0 : index
      %c0_21 = arith.constant 0 : index
      %23 = vector.load %arg6[%c0_20, %c0_21] : memref<1x4xf32, #tpu.memory_space<vmem>>, vector<1x4xf32>
      %24 = vector.broadcast %23 : vector<1x4xf32> to vector<8x4xf32>
      %25 = arith.addf %22, %24 : vector<8x4xf32>
      %26 = arith.negf %25 : vector<8x4xf32>
      %27 = math.exp %26 : vector<8x4xf32>
      %cst_22 = arith.constant 1.000000e+00 : f32
      %28 = vector.broadcast %cst_22 : f32 to vector<8x4xf32>
      %29 = arith.addf %28, %27 : vector<8x4xf32>
      %30 = arith.divf %28, %29 : vector<8x4xf32>
      %c0_23 = arith.constant 0 : index
      %c0_24 = arith.constant 0 : index
      %31 = vector.load %arg7[%c0_23, %c0_24] : memref<8x4xf32, #tpu.memory_space<vmem>>, vector<8x4xf32>
      tpu.vector_store %arg7[%c0_23, %c0_24], %30 {strides = array<i32>} : memref<8x4xf32, #tpu.memory_space<vmem>>, vector<8x4xf32>,
    } else {
    }
    return
  }
  func.func @transform_0(%arg0: i32, %arg1: i32) -> (i32, i32, i32) {
    %c0_i32 = arith.constant 0 : i32
    %c0_i32_0 = arith.constant 0 : i32
    return %arg0, %c0_i32, %arg1 : i32, i32, i32
  }
  func.func @transform_1(%arg0: i32, %arg1: i32) -> (i32, i32) {
    %c0_i32 = arith.constant 0 : i32
    %c0_i32_0 = arith.constant 0 : i32
    %c0_i32_1 = arith.constant 0 : i32
    return %c0_i32, %c0_i32_0 : i32, i32
  }
  func.func @transform_2(%arg0: i32, %arg1: i32) -> (i32, i32) {
    %c0_i32 = arith.constant 0 : i32
    %c0_i32_0 = arith.constant 0 : i32
    %c0_i32_1 = arith.constant 0 : i32
    return %c0_i32, %c0_i32_0 : i32, i32
  }
  func.func @transform_3(%arg0: i32, %arg1: i32) -> (i32, i32) {
    %c0_i32 = arith.constant 0 : i32
    %c0_i32_0 = arith.constant 0 : i32
    %c0_i32_1 = arith.constant 0 : i32
    return %c0_i32, %c0_i32_0 : i32, i32
  }
  func.func @transform_4(%arg0: i32, %arg1: i32) -> (i32, i32) {
    %c0_i32 = arith.constant 0 : i32
    %c0_i32_0 = arith.constant 0 : i32
    %c0_i32_1 = arith.constant 0 : i32
    return %c0_i32, %c0_i32_0 : i32, i32
  }
  func.func @transform_5(%arg0: i32, %arg1: i32) -> (i32, i32) {
    %c0_i32 = arith.constant 0 : i32
    %c0_i32_0 = arith.constant 0 : i32
    return %arg0, %c0_i32 : i32, i32
  }
}

</mosaic_0001>

<llo_original>
// kernel: tpu_custom_call.1
$region0: #{tpu_custom_call.1}
  #allocation0 [shape = 'u32[]', space=smem, size = 0x4, offset = 0x4, fixed_abs, tag = 'smem constant byte address 0x4 - core index']
  #allocation1 [shape = 'u32[144,128]{1,0:T(1,128)}', space=vmem, size = 0x12000, scoped, tag = 'internal scratch']
  #allocation2 [shape = 'f32[8,4]{1,0:T(8,128)}', space=vmem, size = 0x1000, scoped, tag = 'scratch operand']
  %s0 = inlined_call_operand.hbm [shape: f32[2,4,256], index: 0, kind: input, shape index: {}]
  %s1 = inlined_call_operand.vmem [shape: f32[4,2], index: 1, kind: input, shape index: {}]
  %s2 = inlined_call_operand.vmem [shape: f32[1,2], index: 2, kind: input, shape index: {}]
  %s3 = inlined_call_operand.vmem [shape: f32[2,4], index: 3, kind: input, shape index: {}]
  %s4 = inlined_call_operand.vmem [shape: f32[1,4], index: 4, kind: input, shape index: {}]
  %s5 = inlined_call_operand.hbm [shape: f32[2,4], index: 5, kind: output, shape index: {}]
  %s6 = sld [smem:[#allocation0]]
  $region65: #{tpu_custom_call.1} parent=0
    _
  %s8 = ssub.s32 1, %s6
  %s9 = scalar_select 0, %s8, %s6
  $region1: #{tpu_custom_call.1} parent=0
    #allocation3 [shape = 'u8[32768]{0}', space=vmem, size = 0x8000, scoped, tag = 'input window, operand 0']
    #allocation4 [shape = 's32[2]{0}', space=sflag, size = 0x8, scoped, tag = 'scoped memory for tpu_custom_call.1']
    #allocation5 [shape = 's32[2]{0}', space=sflag, size = 0x8, scoped, tag = 'scoped memory for tpu_custom_call.1']
    #allocation6 [shape = 'u8[4096]{0}', space=vmem, size = 0x1000, scoped, tag = 'output window, operand 0, single buffered']
    %10 = vsyncpa [#allocation4], 0
    %s11 = scalar_lea.sflag [#allocation4], 1
    %12 = vsyncpa %s11, 0
    %13 = vsyncpa [#allocation5], 0
    loop: start=0, step=1, limit=4
    $region2: #{tpu_custom_call.1} parent=1 // loop_pre_header
      _
    $region3: #{tpu_custom_call.1} parent=1 // loop_header
      %s15 = sphi 0, %s19
      %p16 = scmp.ge.s32.totalorder %s15, 4
      %s22 = sphi 0, %s34
      %s23 = sphi 0, %s30
      %s24 = sphi 0, %s22
      %s25 = sphi 0, %s23
      %s26 = sphi 0, %s24
      %s27 = sphi 0, %s25
      %s39 = sphi 0, %s41
      %s42 = sphi 0, %s39
      %s43 = sphi 0, %s42
      %s59 = sphi 0, %s43
      %s63 = sphi 0, %s63
      %s65 = sphi 0, %s63
      %s66 = sphi 0, %s65
      %s80 = sphi 0, %s66
      %s84 = sphi 0, %s84
      %s86 = sphi 0, %s84
      %s87 = sphi 0, %s86
      %s101 = sphi 0, %s87
      %s105 = sphi 0, %s105
      %s107 = sphi 0, %s105
      %s108 = sphi 0, %s107
      %s122 = sphi 0, %s108
      %s126 = sphi 0, %s126
      %s128 = sphi 0, %s126
      %s129 = sphi 0, %s128
      %s143 = sphi 0, %s129
      %s149 = sphi 0, %s151
      %s152 = sphi 0, %s149
      %s153 = sphi 0, %s152
      %s169 = sphi 0, %s153
    $region4: #{tpu_custom_call.1} parent=1 // loop_header_branch
      %18 = sbr.rel (%p16) target = $region8
    $region5: #{tpu_custom_call.1} parent=1 // loop_body
      %s20 = ssub.s32 %s15, 1
      %s21 = ssub.s32 %s15, 2
      %s28 = sadd.s32 1, %s23
      %p29 = scmp.ge.s32.totalorder %s28, 2
      %s30 = scalar_select %p29, 0, %s28
      %s31 = sadd.s32 1, %s22
      %s32 = scalar_select %p29, %s31, %s22
      %p33 = scmp.ge.s32.totalorder %s32, 1
      %s34 = scalar_select %p33, 0, %s32
      %s35 = ssub.s32 %s22, %s34
      %s36 = ssub.s32 %s23, %s30
      %s37 = sor.u32 %s35, %s36
      %p38 = scmp.eq.s32.totalorder %s37, 0
      %s40 = sadd.s32 %s39, 1
      %s41 = scalar_select %p38, %s39, %s40
      %p44 = pneg %p38
      %p45 = scmp.eq.s32.totalorder %s15, 1
      %p46 = por %p44, %p45
      %p47 = scmp.ne.s32.totalorder %s39, %s42
      %p48 = scmp.eq.s32.totalorder %s15, 0
      %p49 = por %p47, %p48
      %p50 = scmp.ne.s32.totalorder %s39, %s42
      %p51 = scmp.eq.s32.totalorder %s20, 1
      %p52 = por %p50, %p51
      %p53 = scmp.ne.s32.totalorder %s42, %s43
      %p54 = scmp.eq.s32.totalorder %s20, 0
      %p55 = por %p53, %p54
      %p56 = scmp.ne.s32.totalorder %s42, %s43
      %p57 = scmp.eq.s32.totalorder %s21, 1
      %p58 = por %p56, %p57
      %p60 = scmp.ne.s32.totalorder %s43, %s59
      %p61 = scmp.eq.s32.totalorder %s21, 0
      %p62 = por %p60, %p61
      %s64 = sadd.s32 %s63, 1
      %p67 = scmp.eq.s32.totalorder %s15, 1
      %p68 = scmp.ne.s32.totalorder %s63, %s65
      %p69 = scmp.eq.s32.totalorder %s15, 0
      %p70 = por %p68, %p69
      %p71 = scmp.ne.s32.totalorder %s63, %s65
      %p72 = scmp.eq.s32.totalorder %s20, 1
      %p73 = por %p71, %p72
      %p74 = scmp.ne.s32.totalorder %s65, %s66
      %p75 = scmp.eq.s32.totalorder %s20, 0
      %p76 = por %p74, %p75
      %p77 = scmp.ne.s32.totalorder %s65, %s66
      %p78 = scmp.eq.s32.totalorder %s21, 1
      %p79 = por %p77, %p78
      %p81 = scmp.ne.s32.totalorder %s66, %s80
      %p82 = scmp.eq.s32.totalorder %s21, 0
      %p83 = por %p81, %p82
      %s85 = sadd.s32 %s84, 1
      %p88 = scmp.eq.s32.totalorder %s15, 1
      %p89 = scmp.ne.s32.totalorder %s84, %s86
      %p90 = scmp.eq.s32.totalorder %s15, 0
      %p91 = por %p89, %p90
      %p92 = scmp.ne.s32.totalorder %s84, %s86
      %p93 = scmp.eq.s32.totalorder %s20, 1
      %p94 = por %p92, %p93
      %p95 = scmp.ne.s32.totalorder %s86, %s87
      %p96 = scmp.eq.s32.totalorder %s20, 0
      %p97 = por %p95, %p96
      %p98 = scmp.ne.s32.totalorder %s86, %s87
      %p99 = scmp.eq.s32.totalorder %s21, 1
      %p100 = por %p98, %p99
      %p102 = scmp.ne.s32.totalorder %s87, %s101
      %p103 = scmp.eq.s32.totalorder %s21, 0
      %p104 = por %p102, %p103
      %s106 = sadd.s32 %s105, 1
      %p109 = scmp.eq.s32.totalorder %s15, 1
      %p110 = scmp.ne.s32.totalorder %s105, %s107
      %p111 = scmp.eq.s32.totalorder %s15, 0
      %p112 = por %p110, %p111
      %p113 = scmp.ne.s32.totalorder %s105, %s107
      %p114 = scmp.eq.s32.totalorder %s20, 1
      %p115 = por %p113, %p114
      %p116 = scmp.ne.s32.totalorder %s107, %s108
      %p117 = scmp.eq.s32.totalorder %s20, 0
      %p118 = por %p116, %p117
      %p119 = scmp.ne.s32.totalorder %s107, %s108
      %p120 = scmp.eq.s32.totalorder %s21, 1
      %p121 = por %p119, %p120
      %p123 = scmp.ne.s32.totalorder %s108, %s122
      %p124 = scmp.eq.s32.totalorder %s21, 0
      %p125 = por %p123, %p124
      %s127 = sadd.s32 %s126, 1
      %p130 = scmp.eq.s32.totalorder %s15, 1
      %p131 = scmp.ne.s32.totalorder %s126, %s128
      %p132 = scmp.eq.s32.totalorder %s15, 0
      %p133 = por %p131, %p132
      %p134 = scmp.ne.s32.totalorder %s126, %s128
      %p135 = scmp.eq.s32.totalorder %s20, 1
      %p136 = por %p134, %p135
      %p137 = scmp.ne.s32.totalorder %s128, %s129
      %p138 = scmp.eq.s32.totalorder %s20, 0
      %p139 = por %p137, %p138
      %p140 = scmp.ne.s32.totalorder %s128, %s129
      %p141 = scmp.eq.s32.totalorder %s21, 1
      %p142 = por %p140, %p141
      %p144 = scmp.ne.s32.totalorder %s129, %s143
      %p145 = scmp.eq.s32.totalorder %s21, 0
      %p146 = por %p144, %p145
      %s147 = ssub.s32 %s22, %s34
      %p148 = scmp.eq.s32.totalorder %s147, 0
      %s150 = sadd.s32 %s149, 1
      %s151 = scalar_select %p148, %s149, %s150
      %p154 = pneg %p148
      %p155 = scmp.eq.s32.totalorder %s15, 1
      %p156 = por %p154, %p155
      %p157 = scmp.ne.s32.totalorder %s149, %s152
      %p158 = scmp.eq.s32.totalorder %s15, 0
      %p159 = por %p157, %p158
      %p160 = scmp.ne.s32.totalorder %s149, %s152
      %p161 = scmp.eq.s32.totalorder %s20, 1
      %p162 = por %p160, %p161
      %p163 = scmp.ne.s32.totalorder %s152, %s153
      %p164 = scmp.eq.s32.totalorder %s20, 0
      %p165 = por %p163, %p164
      %p166 = scmp.ne.s32.totalorder %s152, %s153
      %p167 = scmp.eq.s32.totalorder %s21, 1
      %p168 = por %p166, %p167
      %p170 = scmp.ne.s32.totalorder %s153, %s169
      %p171 = scmp.eq.s32.totalorder %s21, 0
      %p172 = por %p170, %p171
      %p173 = scmp.le.s32.totalorder 1, %s15
      %p174 = scmp.lt.s32.totalorder %s15, 3
      %p175 = pnand %p173, %p174
      %p176 = pneg %p175
      // Predicated region
      $region9: #{tpu_custom_call.1} parent=5 // pred_check
        _
      $region10: #{tpu_custom_call.1} parent=5 // pred_check_branch
        %178 = sbr.rel (%p175) target = $region12
      $region11: #{tpu_custom_call.1} parent=5 // pred_region
        %s179 = ssub.s32 %s15, 1
        // Predicated region
        $region13: #{tpu_custom_call.1} parent=11 // pred_check
          %p180 = pneg %p76
        $region14: #{tpu_custom_call.1} parent=11 // pred_check_branch
          %182 = sbr.rel (%p180) target = $region16
        $region15: #{tpu_custom_call.1} parent=11 // pred_region
          _
        $region16: #{tpu_custom_call.1} parent=11 // pred_fallthru
          _
        // Predicated region
        $region17: #{tpu_custom_call.1} parent=11 // pred_check
          %p183 = pneg %p97
        $region18: #{tpu_custom_call.1} parent=11 // pred_check_branch
          %185 = sbr.rel (%p183) target = $region20
        $region19: #{tpu_custom_call.1} parent=11 // pred_region
          _
        $region20: #{tpu_custom_call.1} parent=11 // pred_fallthru
          _
        // Predicated region
        $region21: #{tpu_custom_call.1} parent=11 // pred_check
          %p186 = pneg %p118
        $region22: #{tpu_custom_call.1} parent=11 // pred_check_branch
          %188 = sbr.rel (%p186) target = $region24
        $region23: #{tpu_custom_call.1} parent=11 // pred_region
          _
        $region24: #{tpu_custom_call.1} parent=11 // pred_fallthru
          _
        // Predicated region
        $region25: #{tpu_custom_call.1} parent=11 // pred_check
          %p189 = pneg %p139
        $region26: #{tpu_custom_call.1} parent=11 // pred_check_branch
          %191 = sbr.rel (%p189) target = $region28
        $region27: #{tpu_custom_call.1} parent=11 // pred_region
          _
        $region28: #{tpu_custom_call.1} parent=11 // pred_fallthru
          _
      $region12: #{tpu_custom_call.1} parent=5 // pred_fallthru
        _
      %p192 = scmp.lt.s32.totalorder %s15, 2
      // Predicated region
      $region29: #{tpu_custom_call.1} parent=5 // pred_check
        %p193 = pneg %p192
      $region30: #{tpu_custom_call.1} parent=5 // pred_check_branch
        %195 = sbr.rel (%p193) target = $region32
      $region31: #{tpu_custom_call.1} parent=5 // pred_region
        // Predicated region
        $region33: #{tpu_custom_call.1} parent=31 // pred_check
          %p196 = pneg %p49
        $region34: #{tpu_custom_call.1} parent=31 // pred_check_branch
          %198 = sbr.rel (%p196) target = $region36
        $region35: #{tpu_custom_call.1} parent=31 // pred_region
          %s199 = sand.u32 %s39, 1
          %s200 = scalar_lea.sflag [#allocation4], %s199
          %s201 = sand.u32 %s39, 1
          %s202 = smul.addr %s201, 32
          %s203 = scalar_lea.vmem [#allocation3], %s202
          %s204 = smul.u32 8, %s22
          %s205 = ssub.s32 2, %s204
          %s206 = smul.u32 64, %s205
          %s208 = ssub.s32 512, %s206
          %209 = vsyncadd %s200, %s208
          %p210 = scmp.ne.s32.totalorder 0, %s206
          %s211 = smul.addr %s204, 2
          %s212 = sadd.s32 %s23, %s211
          %s213 = smul.addr %s212, 64
          %s214 = scalar_lea.hbm %s0, %s213
          %s215 = smul.u32 4, %s205
          %s216 = sshll.u32 %s203, 4
          %s217 = int_to_ptr.vmem [resolvable:$true] %s216
          %s218 = sshll.u32 %s215, 4
          %222 = dma.hbm_to_vmem [thread:$0]  (%p210), %s214, %s218, %s217, %s200, 128, 64, 4
        $region36: #{tpu_custom_call.1} parent=31 // pred_fallthru
          _
      $region32: #{tpu_custom_call.1} parent=5 // pred_fallthru
        _
      %p223 = scmp.le.s32.totalorder 1, %s15
      %p224 = scmp.lt.s32.totalorder %s15, 3
      %p225 = pnand %p223, %p224
      %p226 = pneg %p225
      // Predicated region
      $region37: #{tpu_custom_call.1} parent=5 // pred_check
        _
      $region38: #{tpu_custom_call.1} parent=5 // pred_check_branch
        %228 = sbr.rel (%p225) target = $region40
      $region39: #{tpu_custom_call.1} parent=5 // pred_region
        %s229 = ssub.s32 %s15, 1
        %s230 = sand.u32 %s42, 1
        %s231 = scalar_lea.sflag [#allocation4], %s230
        %s232 = sand.u32 %s42, 1
        %s233 = smul.addr %s232, 32
        %s234 = scalar_lea.vmem [#allocation3], %s233
        // Predicated region
        $region41: #{tpu_custom_call.1} parent=39 // pred_check
          %p235 = pneg %p55
        $region42: #{tpu_custom_call.1} parent=39 // pred_check_branch
          %237 = sbr.rel (%p235) target = $region44
        $region43: #{tpu_custom_call.1} parent=39 // pred_region
          %238 = dma.done %s231, 512
        $region44: #{tpu_custom_call.1} parent=39 // pred_fallthru
          _
        %s239 = sand.u32 %s42, 1
        %s240 = scalar_lea.sflag [#allocation4], %s239
        %s241 = sand.u32 %s42, 1
        %s242 = smul.addr %s241, 32
        %s243 = scalar_lea.vmem [#allocation3], %s242
        %p244 = pneg %p55
        %p245 = pneg %p52
        %p246 = pneg %p76
        %p247 = pneg %p73
        %p248 = pneg %p97
        %p249 = pneg %p94
        %p250 = pneg %p118
        %p251 = pneg %p115
        %p252 = pneg %p139
        %p253 = pneg %p136
        %p254 = pneg %p165
        %p255 = pneg %p162
        %s256 = smul.u32 8, %s24
        %s257 = ssub.s32 2, %s256
        %s258 = smul.u32 64, %s257
        %s259 = smul.u32 4, %s24
        %s260 = ssub.s32 1, %s259
        %s261 = smul.u32 32, %s260
        %p262 = scmp.eq.s32.totalorder %s25, 0
        // Predicated region
        $region45: #{tpu_custom_call.1} parent=39 // pred_check
          %p263 = pneg %p262
        $region46: #{tpu_custom_call.1} parent=39 // pred_check_branch
          %265 = sbr.rel (%p263) target = $region48
        $region47: #{tpu_custom_call.1} parent=39 // pred_region
          %vm266 = vcmask 31744
          %267 = vst.msk [vmem:[#allocation2] sm:$0xff] %vm266, 0.0
        $region48: #{tpu_custom_call.1} parent=39 // pred_fallthru
          _
        %v268 = vld [vmem:[%s234] sm:$0xf]
        %v269 = vld [vmem:[%s234 + $0x4] sm:$0xf]
        %v270 = vld [vmem:[%s234 + $0x8] sm:$0xf]
        %v271 = vld [vmem:[%s234 + $0xc] sm:$0xf]
        %v272 = vld [vmem:[%s234 + $0x10] sm:$0xf]
        %v273 = vld [vmem:[%s234 + $0x14] sm:$0xf]
        %v274 = vld [vmem:[%s234 + $0x18] sm:$0xf]
        %v275 = vld [vmem:[%s234 + $0x1c] sm:$0xf]
        %v276 = vld [vmem:[#allocation2] sm:$0xff]
        %vm277 = vcmask 1043456
        %v278 = vsel %vm277, %v268, 0.0
        %279 = vadd.xlane.f32.xlu0 %v278
        %v280 = vpop.xlane.xlu0 %279
        %v281 = vsel %vm277, %v269, 0.0
        %282 = vadd.xlane.f32.xlu0 %v281
        %v283 = vpop.xlane.xlu0 %282
        %v284 = vsel %vm277, %v270, 0.0
        %285 = vadd.xlane.f32.xlu0 %v284
        %v286 = vpop.xlane.xlu0 %285
        %v287 = vsel %vm277, %v271, 0.0
        %288 = vadd.xlane.f32.xlu0 %v287
        %v289 = vpop.xlane.xlu0 %288
        %v290 = vsel %vm277, %v272, 0.0
        %291 = vadd.xlane.f32.xlu0 %v290
        %v292 = vpop.xlane.xlu0 %291
        %v293 = vsel %vm277, %v273, 0.0
        %294 = vadd.xlane.f32.xlu0 %v293
        %v295 = vpop.xlane.xlu0 %294
        %v296 = vsel %vm277, %v274, 0.0
        %297 = vadd.xlane.f32.xlu0 %v296
        %v298 = vpop.xlane.xlu0 %297
        %v299 = vsel %vm277, %v275, 0.0
        %300 = vadd.xlane.f32.xlu0 %v299
        %v301 = vpop.xlane.xlu0 %300
        %v310 = vlaneseq
        %v311 = vand.u32 %v310, 127
        %v312 = vlaneseq
        %v313 = vshrl.u32 %v312, 7
        %v314 = vsub.s32 %v311, %v313
        %v315 = vrot.slane %v280, %v314
        %v316 = vlaneseq
        %v317 = vshrl.u32 %v316, 7
        %v318 = vsub.s32 %v311, %v317
        %v319 = vrot.slane %v283, %v318
        %v320 = vlaneseq
        %v321 = vshrl.u32 %v320, 7
        %v322 = vsub.s32 %v311, %v321
        %v323 = vrot.slane %v286, %v322
        %v324 = vlaneseq
        %v325 = vshrl.u32 %v324, 7
        %v326 = vsub.s32 %v311, %v325
        %v327 = vrot.slane %v289, %v326
        %v328 = vlaneseq
        %v329 = vshrl.u32 %v328, 7
        %v330 = vsub.s32 %v311, %v329
        %v331 = vrot.slane %v292, %v330
        %v332 = vlaneseq
        %v333 = vshrl.u32 %v332, 7
        %v334 = vsub.s32 %v311, %v333
        %v335 = vrot.slane %v295, %v334
        %v336 = vlaneseq
        %v337 = vshrl.u32 %v336, 7
        %v338 = vsub.s32 %v311, %v337
        %v339 = vrot.slane %v298, %v338
        %v340 = vlaneseq
        %v341 = vshrl.u32 %v340, 7
        %v342 = vsub.s32 %v311, %v341
        %v343 = vrot.slane %v301, %v342
        %vm344 = vcmask 1041409
        %v345 = vsel %vm344, %v319, %v315
        %vm346 = vcmask 1042434
        %v347 = vsel %vm346, %v323, %v345
        %vm348 = vcmask 1043459
        %v349 = vsel %vm348, %v327, %v347
        %vm350 = vcmask 1044484
        %v351 = vsel %vm350, %v331, %v349
        %vm352 = vcmask 1045509
        %v353 = vsel %vm352, %v335, %v351
        %vm354 = vcmask 1046534
        %v355 = vsel %vm354, %v339, %v353
        %vm356 = vcmask 1047559
        %v357 = vsel %vm356, %v343, %v355
        %v359 = vadd.f32 %v276, %v357
        %vm360 = vcmask 31744
        %361 = vst.msk [vmem:[#allocation2] sm:$0xff] %vm360, %v359
        %p362 = scmp.eq.s32.totalorder %s25, 1
        // Predicated region
        $region49: #{tpu_custom_call.1} parent=39 // pred_check
          %p363 = pneg %p362
        $region50: #{tpu_custom_call.1} parent=39 // pred_check_branch
          %365 = sbr.rel (%p363) target = $region52
        $region51: #{tpu_custom_call.1} parent=39 // pred_region
          %v366 = vld [vmem:[#allocation2] sm:$0xff]
          %v367 = vmul.f32 %v366, 0.00390625
          %v368 = vld [vmem:[%s1] sm:$0xf]
          %v369 = vld [vmem:[%s2] sm:$0x1]
          %v371 = vlaneseq
          %v372 = vshrl.u32 %v371, 7
          %v373 = vsub.s32 0, %v372
          %v374 = vrot.slane %v369, %v373
          %v377 = vsel %vm360, %v367, 0
          %v380 = vsel %vm277, %v368, 0
          %382 = vmatprep.subr.mxu0 0.0
          %383 = vmatpush1.msra.mxu0 0.0
          %384 = vmatprep.subr.mxu0 0.0
          %385 = vmatpush1.msra.mxu0 0.0
          %386 = vmatprep.subr.mxu0 0.0
          %387 = vmatpush1.msra.mxu0 0.0
          %388 = vmatprep.subr.mxu0 0.0
          %389 = vmatpush1.msra.mxu0 0.0
          %390 = vmatprep.subr.mxu0 0.0
          %391 = vmatpush1.msra.mxu0 0.0
          %392 = vmatprep.subr.mxu0 0.0
          %393 = vmatpush1.msra.mxu0 0.0
          %394 = vmatprep.subr.mxu0 0.0
          %395 = vmatpush1.msra.mxu0 0.0
          %396 = vmatprep.subr.mxu0 0.0
          %397 = vmatpush1.msra.mxu0 0.0
          %398 = vmatprep.subr.mxu0 0.0
          %399 = vmatpush1.msra.mxu0 0.0
          %400 = vmatprep.subr.mxu0 0.0
          %401 = vmatpush1.msra.mxu0 0.0
          %402 = vmatprep.subr.mxu0 0.0
          %403 = vmatpush1.msra.mxu0 0.0
          %404 = vmatprep.subr.mxu0 0.0
          %405 = vmatpush1.msra.mxu0 0.0
          %406 = vmatprep.subr.mxu0 0.0
          %407 = vmatpush1.msra.mxu0 0.0
          %408 = vmatprep.subr.mxu0 0.0
          %409 = vmatpush1.msra.mxu0 0.0
          %410 = vmatprep.subr.mxu0 0.0
          %411 = vmatpush1.msra.mxu0 0.0
          %412 = vmatprep.subr.mxu0 0.0
          %413 = vmatpush1.msra.mxu0 %v380
          %414 = vmatprep.subr.mxu0 0.0
          %415 = vmatpush2.msra.mxu0 0.0
          %416 = vmatprep.subr.mxu0 0.0
          %417 = vmatpush2.msra.mxu0 0.0
          %418 = vmatprep.subr.mxu0 0.0
          %419 = vmatpush2.msra.mxu0 0.0
          %420 = vmatprep.subr.mxu0 0.0
          %421 = vmatpush2.msra.mxu0 0.0
          %422 = vmatprep.subr.mxu0 0.0
          %423 = vmatpush2.msra.mxu0 0.0
          %424 = vmatprep.subr.mxu0 0.0
          %425 = vmatpush2.msra.mxu0 0.0
          %426 = vmatprep.subr.mxu0 0.0
          %427 = vmatpush2.msra.mxu0 0.0
          %428 = vmatprep.subr.mxu0 0.0
          %429 = vmatpush2.msra.mxu0 0.0
          %430 = vmatprep.subr.mxu0 0.0
          %431 = vmatpush2.msra.mxu0 0.0
          %432 = vmatprep.subr.mxu0 0.0
          %433 = vmatpush2.msra.mxu0 0.0
          %434 = vmatprep.subr.mxu0 0.0
          %435 = vmatpush2.msra.mxu0 0.0
          %436 = vmatprep.subr.mxu0 0.0
          %437 = vmatpush2.msra.mxu0 0.0
          %438 = vmatprep.subr.mxu0 0.0
          %439 = vmatpush2.msra.mxu0 0.0
          %440 = vmatprep.subr.mxu0 0.0
          %441 = vmatpush2.msra.mxu0 0.0
          %442 = vmatprep.subr.mxu0 0.0
          %443 = vmatpush2.msra.mxu0 0.0
          %444 = vmatprep.subr.mxu0 0.0
          %445 = vmatpush2.msra.mxu0 0.0
          %446 = vmatprep.mubr.f32.mxu0 0.0
          %447 = vmatmul.mubr.f32.gmra.mxu0 %v377
          %v448 = vpop.f32.mrf.mxu0
          %v449 = vadd.f32 %v374, %v448
          %v450 = vpop.f32.mrf.mxu0
          %451 = vdwg.mxu0
          %v452 = vmax.f32 %v449, 0.0
          %v453 = vld [vmem:[%s3] sm:$0x3]
          %v454 = vld [vmem:[%s4] sm:$0x1]
          %v456 = vlaneseq
          %v457 = vshrl.u32 %v456, 7
          %v458 = vsub.s32 0, %v457
          %v459 = vrot.slane %v454, %v458
          %vm461 = vcmask 15360
          %v463 = vsel %vm461, %v452, 0
          %vm465 = vcmask 1041408
          %v467 = vsel %vm465, %v453, 0
          %469 = vmatprep.subr.mxu0 0.0
          %470 = vmatpush1.msra.mxu0 0.0
          %471 = vmatprep.subr.mxu0 0.0
          %472 = vmatpush1.msra.mxu0 0.0
          %473 = vmatprep.subr.mxu0 0.0
          %474 = vmatpush1.msra.mxu0 0.0
          %475 = vmatprep.subr.mxu0 0.0
          %476 = vmatpush1.msra.mxu0 0.0
          %477 = vmatprep.subr.mxu0 0.0
          %478 = vmatpush1.msra.mxu0 0.0
          %479 = vmatprep.subr.mxu0 0.0
          %480 = vmatpush1.msra.mxu0 0.0
          %481 = vmatprep.subr.mxu0 0.0
          %482 = vmatpush1.msra.mxu0 0.0
          %483 = vmatprep.subr.mxu0 0.0
          %484 = vmatpush1.msra.mxu0 0.0
          %485 = vmatprep.subr.mxu0 0.0
          %486 = vmatpush1.msra.mxu0 0.0
          %487 = vmatprep.subr.mxu0 0.0
          %488 = vmatpush1.msra.mxu0 0.0
          %489 = vmatprep.subr.mxu0 0.0
          %490 = vmatpush1.msra.mxu0 0.0
          %491 = vmatprep.subr.mxu0 0.0
          %492 = vmatpush1.msra.mxu0 0.0
          %493 = vmatprep.subr.mxu0 0.0
          %494 = vmatpush1.msra.mxu0 0.0
          %495 = vmatprep.subr.mxu0 0.0
          %496 = vmatpush1.msra.mxu0 0.0
          %497 = vmatprep.subr.mxu0 0.0
          %498 = vmatpush1.msra.mxu0 0.0
          %499 = vmatprep.subr.mxu0 0.0
          %500 = vmatpush1.msra.mxu0 %v467
          %501 = vmatprep.subr.mxu0 0.0
          %502 = vmatpush2.msra.mxu0 0.0
          %503 = vmatprep.subr.mxu0 0.0
          %504 = vmatpush2.msra.mxu0 0.0
          %505 = vmatprep.subr.mxu0 0.0
          %506 = vmatpush2.msra.mxu0 0.0
          %507 = vmatprep.subr.mxu0 0.0
          %508 = vmatpush2.msra.mxu0 0.0
          %509 = vmatprep.subr.mxu0 0.0
          %510 = vmatpush2.msra.mxu0 0.0
          %511 = vmatprep.subr.mxu0 0.0
          %512 = vmatpush2.msra.mxu0 0.0
          %513 = vmatprep.subr.mxu0 0.0
          %514 = vmatpush2.msra.mxu0 0.0
          %515 = vmatprep.subr.mxu0 0.0
          %516 = vmatpush2.msra.mxu0 0.0
          %517 = vmatprep.subr.mxu0 0.0
          %518 = vmatpush2.msra.mxu0 0.0
          %519 = vmatprep.subr.mxu0 0.0
          %520 = vmatpush2.msra.mxu0 0.0
          %521 = vmatprep.subr.mxu0 0.0
          %522 = vmatpush2.msra.mxu0 0.0
          %523 = vmatprep.subr.mxu0 0.0
          %524 = vmatpush2.msra.mxu0 0.0
          %525 = vmatprep.subr.mxu0 0.0
          %526 = vmatpush2.msra.mxu0 0.0
          %527 = vmatprep.subr.mxu0 0.0
          %528 = vmatpush2.msra.mxu0 0.0
          %529 = vmatprep.subr.mxu0 0.0
          %530 = vmatpush2.msra.mxu0 0.0
          %531 = vmatprep.subr.mxu0 0.0
          %532 = vmatpush2.msra.mxu0 0.0
          %533 = vmatprep.mubr.f32.mxu0 0.0
          %534 = vmatmul.mubr.f32.gmra.mxu0 %v463
          %v535 = vpop.f32.mrf.mxu0
          %v536 = vadd.f32 %v459, %v535
          %v537 = vpop.f32.mrf.mxu0
          %538 = vdwg.mxu0
          %v539 = vxor.u32 %v536, 2147483648
          %v540 = vmul.f32 %v539, 1.442695
          %v541 = vpow.pop %v540
          %v542 = vadd.f32 %v541, 1.0
          %v543 = vrcp.pop %v542
          %v544 = vmul.f32 1.0, %v543
          %545 = vst.msk [vmem:[#allocation6] sm:$0xff] %vm360, %v544
        $region52: #{tpu_custom_call.1} parent=39 // pred_fallthru
          _
        // Predicated region
        $region53: #{tpu_custom_call.1} parent=39 // pred_check
          %p546 = pneg %p162
        $region54: #{tpu_custom_call.1} parent=39 // pred_check_branch
          %548 = sbr.rel (%p546) target = $region56
        $region55: #{tpu_custom_call.1} parent=39 // pred_region
          %s549 = smul.u32 4, %s24
          %s550 = ssub.s32 1, %s549
          %s551 = smul.u32 32, %s550
          %s553 = ssub.s32 128, %s551
          %554 = vsyncadd [#allocation5], %s553
          %p555 = scmp.ne.s32.totalorder 0, %s551
          %s556 = smul.addr %s549, 32
          %s557 = scalar_lea.hbm %s5, %s556
          %s558 = smul.u32 2, %s550
          %s559 = sshll.u32 [#allocation6], 4
          %s560 = int_to_ptr.vmem [resolvable:$true] %s559
          %s561 = sshll.u32 %s558, 4
          %565 = dma.vmem_to_hbm [thread:$0]  (%p555), %s560, %s561, %s557, [#allocation5], 32, 32, 2
        $region56: #{tpu_custom_call.1} parent=39 // pred_fallthru
          _
        // Predicated region
        $region57: #{tpu_custom_call.1} parent=39 // pred_check
          %p566 = pneg %p162
        $region58: #{tpu_custom_call.1} parent=39 // pred_check_branch
          %568 = sbr.rel (%p566) target = $region60
        $region59: #{tpu_custom_call.1} parent=39 // pred_region
          %569 = dma.done [#allocation5], 128
        $region60: #{tpu_custom_call.1} parent=39 // pred_fallthru
          _
      $region40: #{tpu_custom_call.1} parent=5 // pred_fallthru
        _
      %p570 = scmp.le.s32.totalorder 2, %s15
      // Predicated region
      $region61: #{tpu_custom_call.1} parent=5 // pred_check
        %p571 = pneg %p570
      $region62: #{tpu_custom_call.1} parent=5 // pred_check_branch
        %573 = sbr.rel (%p571) target = $region64
      $region63: #{tpu_custom_call.1} parent=5 // pred_region
        %s574 = ssub.s32 %s15, 2
      $region64: #{tpu_custom_call.1} parent=5 // pred_fallthru
        _
    $region6: #{tpu_custom_call.1} parent=1 // loop_footer
      %s19 = sadd.s32 1, %s15
    $region7: #{tpu_custom_call.1} parent=1 // loop_footer_branch
      %14 = sbr.rel target = $region3
    $region8: #{tpu_custom_call.1} parent=1 // loop_exit
      _
    %575 = vsyncpa [#allocation4], 1
    %s576 = scalar_lea.sflag [#allocation4], 1
    %577 = vsyncpa %s576, 1
    %578 = vsyncpa [#allocation5], 1
    %s579 = scalar_lea.sflag [#allocation5], 1
    %580 = vsyncpa %s579, 1

</llo_original>
